<compile_context>
chip_gen: v7x
topology: tpu7x:2x2x1
jax: 0.10.0
libtpu: 0.0.40
codegen_flags: <defaults>
</compile_context>

<pallas_src>
import functools

import jax
import jax.numpy as jnp
from jax import lax
from jax.experimental import pallas as pl
from jax.experimental.pallas import tpu as pltpu


def _round_up(n, m):
    return ((n + m - 1) // m) * m


def _cdiv(a, b):
    return (a + b - 1) // b


def chessnet_kernel(x_ref, w1_ref, b1_ref, w2_ref, b2_ref, w3_ref, b3_ref, o_ref,
                    *, compute_dtype):
    """Fused fc1 -> ReLU -> fc2 -> ReLU -> fc3 -> tanh for one batch tile.

    x_ref : (TM, 64)   native dtype (f32/bf16), batch on sublanes
    w1    : (64, 128)  compute dtype
    b1    : (1, 128)   f32
    w2    : (128, 64)  compute dtype
    b2    : (1, 64)    f32
    w3    : (1, 64)    compute dtype (fc3 weight as a lane row)
    b3    : (1, 1)     f32 scalar in SMEM
    o_ref : (1, 1, TM) f32, lane-dense (batch on lanes)
    """
    cdt = compute_dtype

    # Cast to the MXU compute dtype in-kernel (no extra HBM pass in the wrapper).
    x = x_ref[...].astype(cdt)

    # fc1 + ReLU (MXU accumulates in f32; elementwise stays f32 — works on v5e too).
    h1 = jnp.dot(x, w1_ref[...], preferred_element_type=jnp.float32)
    h1 = jnp.maximum(h1 + b1_ref[...], 0.0)

    # fc2 + ReLU.
    # TODO(synk): if a v5e bundle dump shows the single vst slot binding on the
    # (TM,128)/(TM,64) intermediates, sub-chunk this body with an unrolled
    # lax.fori_loop over ~256-row slices to bound live ranges.
    h2 = jnp.dot(h1.astype(cdt), w2_ref[...], preferred_element_type=jnp.float32)
    h2 = jnp.maximum(h2 + b2_ref[...], 0.0)

    # fc3: contract the 64-feature axis of the weight row against h2's feature axis.
    # (1,64) . (TM,64)^T -> (1,TM): the result is lane-dense (batch on lanes) so the
    # final store is an unmasked full-lane vst.  The (TM,64) relayout for the MXU is
    # expected to ride the otherwise-idle XLU slot.
    h3 = lax.dot_general(
        w3_ref[...],
        h2.astype(cdt),
        dimension_numbers=(((1,), (1,)), ((), ())),
        preferred_element_type=jnp.float32,
    )

    o_ref[...] = jnp.tanh(h3 + b3_ref[0, 0]).reshape(o_ref.shape)


@functools.partial(jax.jit, static_argnames=("tm", "compute_dtype"))
def chessnet_forward(x, w1, b1, w2, b2, w3, b3, *, tm=2048, compute_dtype=jnp.bfloat16):
    """ChessNet forward.

    x  : (B, 64) float32 (or bfloat16)
    w* : stored as (in_features, out_features) (i.e. PyTorch weight transposed)
    b1 : (1, 128), b2 : (1, 64), b3 : (1, 1)  float32
    Returns (B, 1) float32.
    """
    B, D_in = x.shape
    assert D_in == 64

    cdt = jnp.dtype(compute_dtype)

    # Sublane granularity of the x tile in its *native* dtype.
    sub = 16 if x.dtype == jnp.bfloat16 else 8
    # Cap the tile so that B splits into >=2 "parallel" grid steps whenever possible
    # (keeps both v7x TensorCores busy); tm (~2048) amortizes the ~0.35us/step overhead
    # for large B.  Ragged last tile: no jnp.pad — Pallas masks the partial edge block.
    tm_eff = max(sub, min(_round_up(tm, sub), _round_up(_cdiv(B, 2), sub)))
    num_tiles = _cdiv(B, tm_eff)

    # Weights are tiny (<70 KiB total) and resident in VMEM; casting them here is free
    # relative to the x stream.  x itself is cast inside the kernel.
    w1c = w1.astype(cdt)
    w2c = w2.astype(cdt)
    w3r = w3.reshape(1, 64).astype(cdt)            # fc3 weight as a lane row
    b1r = b1.reshape(1, 128).astype(jnp.float32)
    b2r = b2.reshape(1, 64).astype(jnp.float32)
    b3s = b3.reshape(1, 1).astype(jnp.float32)     # single scalar -> SMEM

    kernel = functools.partial(chessnet_kernel, compute_dtype=cdt)

    out = pl.pallas_call(
        kernel,
        out_shape=jax.ShapeDtypeStruct((num_tiles, 1, tm_eff), jnp.float32),
        grid_spec=pltpu.PrefetchScalarGridSpec(
            num_scalar_prefetch=0,
            grid=(num_tiles,),
            in_specs=[
                # activations: tiled over batch (batch on sublanes, features on lanes).
                # If xprof on v6e shows exposed input DMA, add
                # pipeline_mode=pl.Buffered(3) to this spec only.
                pl.BlockSpec((tm_eff, 64), lambda i: (i, 0)),
                # weights / biases: constant index_maps -> resident across grid steps.
                pl.BlockSpec((64, 128), lambda i: (0, 0)),
                pl.BlockSpec((1, 128), lambda i: (0, 0)),
                pl.BlockSpec((128, 64), lambda i: (0, 0)),
                pl.BlockSpec((1, 64), lambda i: (0, 0)),
                pl.BlockSpec((1, 64), lambda i: (0, 0)),
                # b3: scalar in SMEM (avoids a padded (8,128) VMEM tile + extra DMA).
                pl.BlockSpec(memory_space=pltpu.MemorySpace.SMEM),
            ],
            # lane-dense output: tile i holds batch rows [i*tm, (i+1)*tm) on lanes.
            out_specs=pl.BlockSpec((1, 1, tm_eff), lambda i: (i, 0, 0)),
        ),
        compiler_params=pltpu.CompilerParams(
            dimension_semantics=("parallel",),
        ),
    )(x, w1c, b1r, w2c, b2r, w3r, b3s)

    # (num_tiles, 1, tm_eff) -> (B, 1); garbage tail rows of the last tile are dropped.
    return out.reshape(-1)[:B].reshape(B, 1)


def init_linear(key, fan_in, fan_out):
    """Deterministic init mimicking PyTorch nn.Linear default (uniform +-1/sqrt(fan_in))."""
    kw, kb = jax.random.split(key)
    bound = 1.0 / jnp.sqrt(jnp.float32(fan_in))
    # stored as (in, out) so the kernel computes x @ W + b
    w = jax.random.uniform(kw, (fan_in, fan_out), jnp.float32, -bound, bound)
    b = jax.random.uniform(kb, (1, fan_out), jnp.float32, -bound, bound)
    return w, b


def reference_forward(x, w1, b1, w2, b2, w3, b3):
    h1 = jnp.maximum(x @ w1 + b1, 0.0)
    h2 = jnp.maximum(h1 @ w2 + b2, 0.0)
    return jnp.tanh(h2 @ w3 + b3)


if __name__ == "__main__":
    key = jax.random.PRNGKey(0)
    k_x, k1, k2, k3 = jax.random.split(key, 4)

    w1, b1 = init_linear(k1, 64, 128)
    w2, b2 = init_linear(k2, 128, 64)
    w3, b3 = init_linear(k3, 64, 1)

    # 1) Small, non-multiple-of-8 batch: exercises the ragged edge block and the
    #    >=2-tile split; default bf16 matmul compute dtype.
    B = 37
    x = jax.random.normal(k_x, (B, 64), jnp.float32)
    ref = reference_forward(x, w1, b1, w2, b2, w3, b3)
    out = jax.block_until_ready(chessnet_forward(x, w1, b1, w2, b2, w3, b3))
    assert out.shape == (B, 1)
    assert jnp.allclose(out, ref, atol=3e-2, rtol=3e-2), "bf16 mismatch vs reference"

    # 2) f32 compute dtype for a tight numerical check.
    out_f32 = jax.block_until_ready(
        chessnet_forward(x, w1, b1, w2, b2, w3, b3, compute_dtype=jnp.float32)
    )
    assert jnp.allclose(out_f32, ref, atol=2e-5, rtol=1e-4), "f32 mismatch vs reference"

    # 3) Multi-tile grid with a ragged last tile (small tm forces several grid steps).
    B2 = 300
    x2 = jax.random.normal(k_x, (B2, 64), jnp.float32)
    ref2 = reference_forward(x2, w1, b1, w2, b2, w3, b3)
    out2 = jax.block_until_ready(
        chessnet_forward(x2, w1, b1, w2, b2, w3, b3, tm=128, compute_dtype=jnp.float32)
    )
    assert out2.shape == (B2, 1)
    assert jnp.allclose(out2, ref2, atol=2e-5, rtol=1e-4), "multi-tile mismatch vs reference"

    # 4) Tiny batch (< one sublane group) still works.
    B3 = 5
    x3 = jax.random.normal(k_x, (B3, 64), jnp.float32)
    ref3 = reference_forward(x3, w1, b1, w2, b2, w3, b3)
    out3 = jax.block_until_ready(chessnet_forward(x3, w1, b1, w2, b2, w3, b3))
    assert out3.shape == (B3, 1)
    assert jnp.allclose(out3, ref3, atol=3e-2, rtol=3e-2), "tiny-batch mismatch vs reference"

    print("KERNEL_OK")
</pallas_src>

<mosaic_0001>
module attributes {stable_mosaic.version = 11 : i64} {
  func.func @chessnet_kernel(%arg0: i32, %arg1: memref<24x64xf32, #tpu.memory_space<vmem>>, %arg2: memref<64x128xbf16, #tpu.memory_space<vmem>>, %arg3: memref<1x128xf32, #tpu.memory_space<vmem>>, %arg4: memref<128x64xbf16, #tpu.memory_space<vmem>>, %arg5: memref<1x64xf32, #tpu.memory_space<vmem>>, %arg6: memref<1x64xbf16, #tpu.memory_space<vmem>>, %arg7: memref<1x1xf32, #tpu.memory_space<smem>>, %arg8: memref<1x1x24xf32, #tpu.memory_space<vmem>>) attributes {dimension_semantics = [#tpu.dimension_semantics<parallel>], iteration_bounds = array<i64: 2>, scalar_prefetch = 0 : i64, scratch_operands = 0 : i64, tpu.core_type = #tpu.core_type<tc>, window_params = [{transform_indices = @transform_0, window_bounds = array<i64: 24, 64>}, {pipeline_mode = #tpu.pipeline_mode<synchronous>, transform_indices = @transform_1, window_bounds = array<i64: 64, 128>}, {pipeline_mode = #tpu.pipeline_mode<synchronous>, transform_indices = @transform_2, window_bounds = array<i64: 1, 128>}, {pipeline_mode = #tpu.pipeline_mode<synchronous>, transform_indices = @transform_3, window_bounds = array<i64: 128, 64>}, {pipeline_mode = #tpu.pipeline_mode<synchronous>, transform_indices = @transform_4, window_bounds = array<i64: 1, 64>}, {pipeline_mode = #tpu.pipeline_mode<synchronous>, transform_indices = @transform_5, window_bounds = array<i64: 1, 64>}, {transform_indices = @transform_6, window_bounds = array<i64: 1, 1>}, {transform_indices = @transform_7, window_bounds = array<i64: 1, 1, 24>}]} {
    %c0 = arith.constant 0 : index
    %c0_0 = arith.constant 0 : index
    %0 = vector.load %arg1[%c0, %c0_0] : memref<24x64xf32, #tpu.memory_space<vmem>>, vector<24x64xf32>
    %1 = arith.truncf %0 : vector<24x64xf32> to vector<24x64xbf16>
    %c0_1 = arith.constant 0 : index
    %c0_2 = arith.constant 0 : index
    %2 = vector.load %arg2[%c0_1, %c0_2] : memref<64x128xbf16, #tpu.memory_space<vmem>>, vector<64x128xbf16>
    %cst = arith.constant dense<0.000000e+00> : vector<24x128xf32>
    %3 = tpu.matmul %1, %2, %cst {dimension_numbers = #tpu.dot_dimension_numbers<[1], [0], [0], [1], [0, 0, 1, 1], [], []>} : vector<24x64xbf16>, vector<64x128xbf16>, vector<24x128xf32> -> vector<24x128xf32>
    %c0_3 = arith.constant 0 : index
    %c0_4 = arith.constant 0 : index
    %4 = vector.load %arg3[%c0_3, %c0_4] : memref<1x128xf32, #tpu.memory_space<vmem>>, vector<1x128xf32>
    %5 = vector.broadcast %4 : vector<1x128xf32> to vector<24x128xf32>
    %6 = arith.addf %3, %5 : vector<24x128xf32>
    %cst_5 = arith.constant 0.000000e+00 : f32
    %7 = vector.broadcast %cst_5 : f32 to vector<24x128xf32>
    %8 = arith.maximumf %6, %7 : vector<24x128xf32>
    %9 = arith.truncf %8 : vector<24x128xf32> to vector<24x128xbf16>
    %c0_6 = arith.constant 0 : index
    %c0_7 = arith.constant 0 : index
    %10 = vector.load %arg4[%c0_6, %c0_7] : memref<128x64xbf16, #tpu.memory_space<vmem>>, vector<128x64xbf16>
    %cst_8 = arith.constant dense<0.000000e+00> : vector<24x64xf32>
    %11 = tpu.matmul %9, %10, %cst_8 {dimension_numbers = #tpu.dot_dimension_numbers<[1], [0], [0], [1], [0, 0, 1, 1], [], []>} : vector<24x128xbf16>, vector<128x64xbf16>, vector<24x64xf32> -> vector<24x64xf32>
    %c0_9 = arith.constant 0 : index
    %c0_10 = arith.constant 0 : index
    %12 = vector.load %arg5[%c0_9, %c0_10] : memref<1x64xf32, #tpu.memory_space<vmem>>, vector<1x64xf32>
    %13 = vector.broadcast %12 : vector<1x64xf32> to vector<24x64xf32>
    %14 = arith.addf %11, %13 : vector<24x64xf32>
    %cst_11 = arith.constant 0.000000e+00 : f32
    %15 = vector.broadcast %cst_11 : f32 to vector<24x64xf32>
    %16 = arith.maximumf %14, %15 : vector<24x64xf32>
    %c0_12 = arith.constant 0 : index
    %c0_13 = arith.constant 0 : index
    %17 = vector.load %arg6[%c0_12, %c0_13] : memref<1x64xbf16, #tpu.memory_space<vmem>>, vector<1x64xbf16>
    %18 = arith.truncf %16 : vector<24x64xf32> to vector<24x64xbf16>
    %cst_14 = arith.constant dense<0.000000e+00> : vector<1x24xf32>
    %19 = tpu.matmul %17, %18, %cst_14 {dimension_numbers = #tpu.dot_dimension_numbers<[1], [1], [0], [0], [0, 0, 1, 0], [], []>} : vector<1x64xbf16>, vector<24x64xbf16>, vector<1x24xf32> -> vector<1x24xf32>
    %c0_15 = arith.constant 0 : index
    %c0_16 = arith.constant 0 : index
    %20 = memref.load %arg7[%c0_15, %c0_16] : memref<1x1xf32, #tpu.memory_space<smem>>
    %21 = vector.broadcast %20 : f32 to vector<1x24xf32>
    %22 = arith.addf %19, %21 : vector<1x24xf32>
    %23 = math.tanh %22 : vector<1x24xf32>
    %24 = vector.shape_cast %23 : vector<1x24xf32> to vector<1x1x24xf32>
    %c0_17 = arith.constant 0 : index
    %c0_18 = arith.constant 0 : index
    %c0_19 = arith.constant 0 : index
    %25 = vector.load %arg8[%c0_17, %c0_18, %c0_19] : memref<1x1x24xf32, #tpu.memory_space<vmem>>, vector<1x1x24xf32>
    tpu.vector_store %arg8[%c0_17, %c0_18, %c0_19], %24 {strides = array<i32>} : memref<1x1x24xf32, #tpu.memory_space<vmem>>, vector<1x1x24xf32>,
    return
  }
  func.func @transform_0(%arg0: i32) -> (i32, i32) {
    %c0_i32 = arith.constant 0 : i32
    %c0_i32_0 = arith.constant 0 : i32
    return %arg0, %c0_i32 : i32, i32
  }
  func.func @transform_1(%arg0: i32) -> (i32, i32) {
    %c0_i32 = arith.constant 0 : i32
    %c0_i32_0 = arith.constant 0 : i32
    %c0_i32_1 = arith.constant 0 : i32
    return %c0_i32, %c0_i32_0 : i32, i32
  }
  func.func @transform_2(%arg0: i32) -> (i32, i32) {
    %c0_i32 = arith.constant 0 : i32
    %c0_i32_0 = arith.constant 0 : i32
    %c0_i32_1 = arith.constant 0 : i32
    return %c0_i32, %c0_i32_0 : i32, i32
  }
  func.func @transform_3(%arg0: i32) -> (i32, i32) {
    %c0_i32 = arith.constant 0 : i32
    %c0_i32_0 = arith.constant 0 : i32
    %c0_i32_1 = arith.constant 0 : i32
    return %c0_i32, %c0_i32_0 : i32, i32
  }
  func.func @transform_4(%arg0: i32) -> (i32, i32) {
    %c0_i32 = arith.constant 0 : i32
    %c0_i32_0 = arith.constant 0 : i32
    %c0_i32_1 = arith.constant 0 : i32
    return %c0_i32, %c0_i32_0 : i32, i32
  }
  func.func @transform_5(%arg0: i32) -> (i32, i32) {
    %c0_i32 = arith.constant 0 : i32
    %c0_i32_0 = arith.constant 0 : i32
    %c0_i32_1 = arith.constant 0 : i32
    return %c0_i32, %c0_i32_0 : i32, i32
  }
  func.func @transform_6(%arg0: i32) -> (i32, i32) {
    %c0_i32 = arith.constant 0 : i32
    %c0_i32_0 = arith.constant 0 : i32
    %c0_i32_1 = arith.constant 0 : i32
    return %c0_i32, %c0_i32_0 : i32, i32
  }
  func.func @transform_7(%arg0: i32) -> (i32, i32, i32) {
    %c0_i32 = arith.constant 0 : i32
    %c0_i32_0 = arith.constant 0 : i32
    %c0_i32_1 = arith.constant 0 : i32
    return %arg0, %c0_i32, %c0_i32_0 : i32, i32, i32
  }
}

</mosaic_0001>

<llo_original>
// kernel: chessnet_forward.1
$region0: #{chessnet_forward.1}
  #allocation0 [shape = 'u32[]', space=smem, size = 0x4, offset = 0x4, fixed_abs, tag = 'smem constant byte address 0x4 - core index']
  #allocation1 [shape = 'u32[144,128]{1,0:T(1,128)}', space=vmem, size = 0x12000, scoped, tag = 'internal scratch']
  #allocation2 [shape = 'f32[1,1]{1,0:T(1,128)S(6)}', space=smem, size = 0x200, scoped, tag = 'scoped memory for chessnet_forward.1']
  %s0 = inlined_call_operand.vmem [shape: f32[37,64], index: 0, kind: input, shape index: {}]
  %s1 = inlined_call_operand.vmem [shape: bf16[64,128], index: 1, kind: input, shape index: {}]
  %s2 = inlined_call_operand.vmem [shape: f32[1,128], index: 2, kind: input, shape index: {}]
  %s3 = inlined_call_operand.vmem [shape: bf16[128,64], index: 3, kind: input, shape index: {}]
  %s4 = inlined_call_operand.vmem [shape: f32[1,64], index: 4, kind: input, shape index: {}]
  %s5 = inlined_call_operand.vmem [shape: bf16[1,64], index: 5, kind: input, shape index: {}]
  %s6 = inlined_call_operand.<no memory space> [shape: f32[1,1], index: 6, kind: input, shape index: {}]
  %s7 = inlined_call_operand.vmem [shape: f32[2,1,24], index: 7, kind: output, shape index: {}]
  %s8 = sld [smem:[#allocation0]]
  $region61: #{chessnet_forward.1} parent=0
    _
  %s10 = ssub.s32 1, %s8
  %s11 = scalar_select 0, %s10, %s8
  %12 = sst [smem:[#allocation2]] %s6
  loop: start=0, step=1, limit=4
  $region2: #{chessnet_forward.1} parent=0 // loop_pre_header
    _
  $region3: #{chessnet_forward.1} parent=0 // loop_header
    %s14 = sphi 0, %s18
    %p15 = scmp.ge.s32.totalorder %s14, 4
    %s24 = sphi 0, %s26
    %s27 = sphi 0, %s24
    %s28 = sphi 0, %s27
    %s44 = sphi 0, %s28
    %s48 = sphi 0, %s48
    %s50 = sphi 0, %s48
    %s51 = sphi 0, %s50
    %s65 = sphi 0, %s51
    %s69 = sphi 0, %s69
    %s71 = sphi 0, %s69
    %s72 = sphi 0, %s71
    %s86 = sphi 0, %s72
    %s90 = sphi 0, %s90
    %s92 = sphi 0, %s90
    %s93 = sphi 0, %s92
    %s107 = sphi 0, %s93
    %s111 = sphi 0, %s111
    %s113 = sphi 0, %s111
    %s114 = sphi 0, %s113
    %s128 = sphi 0, %s114
    %s132 = sphi 0, %s132
    %s134 = sphi 0, %s132
    %s135 = sphi 0, %s134
    %s149 = sphi 0, %s135
    %s153 = sphi 0, %s153
    %s155 = sphi 0, %s153
    %s156 = sphi 0, %s155
    %s170 = sphi 0, %s156
    %s176 = sphi 0, %s178
    %s179 = sphi 0, %s176
    %s180 = sphi 0, %s179
    %s196 = sphi 0, %s180
  $region4: #{chessnet_forward.1} parent=0 // loop_header_branch
    %17 = sbr.rel (%p15) target = $region8
  $region5: #{chessnet_forward.1} parent=0 // loop_body
    %s19 = ssub.s32 %s14, 1
    %s20 = ssub.s32 %s14, 2
    %s21 = sadd.s32 %s14, 1
    %s22 = ssub.s32 %s14, %s21
    %p23 = scmp.eq.s32.totalorder %s22, 0
    %s25 = sadd.s32 %s24, 1
    %s26 = scalar_select %p23, %s24, %s25
    %p29 = pneg %p23
    %p30 = scmp.eq.s32.totalorder %s14, 1
    %p31 = por %p29, %p30
    %p32 = scmp.ne.s32.totalorder %s24, %s27
    %p33 = scmp.eq.s32.totalorder %s14, 0
    %p34 = por %p32, %p33
    %p35 = scmp.ne.s32.totalorder %s24, %s27
    %p36 = scmp.eq.s32.totalorder %s19, 1
    %p37 = por %p35, %p36
    %p38 = scmp.ne.s32.totalorder %s27, %s28
    %p39 = scmp.eq.s32.totalorder %s19, 0
    %p40 = por %p38, %p39
    %p41 = scmp.ne.s32.totalorder %s27, %s28
    %p42 = scmp.eq.s32.totalorder %s20, 1
    %p43 = por %p41, %p42
    %p45 = scmp.ne.s32.totalorder %s28, %s44
    %p46 = scmp.eq.s32.totalorder %s20, 0
    %p47 = por %p45, %p46
    %s49 = sadd.s32 %s48, 1
    %p52 = scmp.eq.s32.totalorder %s14, 1
    %p53 = scmp.ne.s32.totalorder %s48, %s50
    %p54 = scmp.eq.s32.totalorder %s14, 0
    %p55 = por %p53, %p54
    %p56 = scmp.ne.s32.totalorder %s48, %s50
    %p57 = scmp.eq.s32.totalorder %s19, 1
    %p58 = por %p56, %p57
    %p59 = scmp.ne.s32.totalorder %s50, %s51
    %p60 = scmp.eq.s32.totalorder %s19, 0
    %p61 = por %p59, %p60
    %p62 = scmp.ne.s32.totalorder %s50, %s51
    %p63 = scmp.eq.s32.totalorder %s20, 1
    %p64 = por %p62, %p63
    %p66 = scmp.ne.s32.totalorder %s51, %s65
    %p67 = scmp.eq.s32.totalorder %s20, 0
    %p68 = por %p66, %p67
    %s70 = sadd.s32 %s69, 1
    %p73 = scmp.eq.s32.totalorder %s14, 1
    %p74 = scmp.ne.s32.totalorder %s69, %s71
    %p75 = scmp.eq.s32.totalorder %s14, 0
    %p76 = por %p74, %p75
    %p77 = scmp.ne.s32.totalorder %s69, %s71
    %p78 = scmp.eq.s32.totalorder %s19, 1
    %p79 = por %p77, %p78
    %p80 = scmp.ne.s32.totalorder %s71, %s72
    %p81 = scmp.eq.s32.totalorder %s19, 0
    %p82 = por %p80, %p81
    %p83 = scmp.ne.s32.totalorder %s71, %s72
    %p84 = scmp.eq.s32.totalorder %s20, 1
    %p85 = por %p83, %p84
    %p87 = scmp.ne.s32.totalorder %s72, %s86
    %p88 = scmp.eq.s32.totalorder %s20, 0
    %p89 = por %p87, %p88
    %s91 = sadd.s32 %s90, 1
    %p94 = scmp.eq.s32.totalorder %s14, 1
    %p95 = scmp.ne.s32.totalorder %s90, %s92
    %p96 = scmp.eq.s32.totalorder %s14, 0
    %p97 = por %p95, %p96
    %p98 = scmp.ne.s32.totalorder %s90, %s92
    %p99 = scmp.eq.s32.totalorder %s19, 1
    %p100 = por %p98, %p99
    %p101 = scmp.ne.s32.totalorder %s92, %s93
    %p102 = scmp.eq.s32.totalorder %s19, 0
    %p103 = por %p101, %p102
    %p104 = scmp.ne.s32.totalorder %s92, %s93
    %p105 = scmp.eq.s32.totalorder %s20, 1
    %p106 = por %p104, %p105
    %p108 = scmp.ne.s32.totalorder %s93, %s107
    %p109 = scmp.eq.s32.totalorder %s20, 0
    %p110 = por %p108, %p109
    %s112 = sadd.s32 %s111, 1
    %p115 = scmp.eq.s32.totalorder %s14, 1
    %p116 = scmp.ne.s32.totalorder %s111, %s113
    %p117 = scmp.eq.s32.totalorder %s14, 0
    %p118 = por %p116, %p117
    %p119 = scmp.ne.s32.totalorder %s111, %s113
    %p120 = scmp.eq.s32.totalorder %s19, 1
    %p121 = por %p119, %p120
    %p122 = scmp.ne.s32.totalorder %s113, %s114
    %p123 = scmp.eq.s32.totalorder %s19, 0
    %p124 = por %p122, %p123
    %p125 = scmp.ne.s32.totalorder %s113, %s114
    %p126 = scmp.eq.s32.totalorder %s20, 1
    %p127 = por %p125, %p126
    %p129 = scmp.ne.s32.totalorder %s114, %s128
    %p130 = scmp.eq.s32.totalorder %s20, 0
    %p131 = por %p129, %p130
    %s133 = sadd.s32 %s132, 1
    %p136 = scmp.eq.s32.totalorder %s14, 1
    %p137 = scmp.ne.s32.totalorder %s132, %s134
    %p138 = scmp.eq.s32.totalorder %s14, 0
    %p139 = por %p137, %p138
    %p140 = scmp.ne.s32.totalorder %s132, %s134
    %p141 = scmp.eq.s32.totalorder %s19, 1
    %p142 = por %p140, %p141
    %p143 = scmp.ne.s32.totalorder %s134, %s135
    %p144 = scmp.eq.s32.totalorder %s19, 0
    %p145 = por %p143, %p144
    %p146 = scmp.ne.s32.totalorder %s134, %s135
    %p147 = scmp.eq.s32.totalorder %s20, 1
    %p148 = por %p146, %p147
    %p150 = scmp.ne.s32.totalorder %s135, %s149
    %p151 = scmp.eq.s32.totalorder %s20, 0
    %p152 = por %p150, %p151
    %s154 = sadd.s32 %s153, 1
    %p157 = scmp.eq.s32.totalorder %s14, 1
    %p158 = scmp.ne.s32.totalorder %s153, %s155
    %p159 = scmp.eq.s32.totalorder %s14, 0
    %p160 = por %p158, %p159
    %p161 = scmp.ne.s32.totalorder %s153, %s155
    %p162 = scmp.eq.s32.totalorder %s19, 1
    %p163 = por %p161, %p162
    %p164 = scmp.ne.s32.totalorder %s155, %s156
    %p165 = scmp.eq.s32.totalorder %s19, 0
    %p166 = por %p164, %p165
    %p167 = scmp.ne.s32.totalorder %s155, %s156
    %p168 = scmp.eq.s32.totalorder %s20, 1
    %p169 = por %p167, %p168
    %p171 = scmp.ne.s32.totalorder %s156, %s170
    %p172 = scmp.eq.s32.totalorder %s20, 0
    %p173 = por %p171, %p172
    %s174 = ssub.s32 %s14, %s21
    %p175 = scmp.eq.s32.totalorder %s174, 0
    %s177 = sadd.s32 %s176, 1
    %s178 = scalar_select %p175, %s176, %s177
    %p181 = pneg %p175
    %p182 = scmp.eq.s32.totalorder %s14, 1
    %p183 = por %p181, %p182
    %p184 = scmp.ne.s32.totalorder %s176, %s179
    %p185 = scmp.eq.s32.totalorder %s14, 0
    %p186 = por %p184, %p185
    %p187 = scmp.ne.s32.totalorder %s176, %s179
    %p188 = scmp.eq.s32.totalorder %s19, 1
    %p189 = por %p187, %p188
    %p190 = scmp.ne.s32.totalorder %s179, %s180
    %p191 = scmp.eq.s32.totalorder %s19, 0
    %p192 = por %p190, %p191
    %p193 = scmp.ne.s32.totalorder %s179, %s180
    %p194 = scmp.eq.s32.totalorder %s20, 1
    %p195 = por %p193, %p194
    %p197 = scmp.ne.s32.totalorder %s180, %s196
    %p198 = scmp.eq.s32.totalorder %s20, 0
    %p199 = por %p197, %p198
    %p200 = scmp.le.s32.totalorder 1, %s14
    %p201 = scmp.lt.s32.totalorder %s14, 3
    %p202 = pnand %p200, %p201
    %p203 = pneg %p202
    // Predicated region
    $region9: #{chessnet_forward.1} parent=5 // pred_check
      _
    $region10: #{chessnet_forward.1} parent=5 // pred_check_branch
      %205 = sbr.rel (%p202) target = $region12
    $region11: #{chessnet_forward.1} parent=5 // pred_region
      %s206 = ssub.s32 %s14, 1
      // Predicated region
      $region13: #{chessnet_forward.1} parent=11 // pred_check
        %p207 = pneg %p61
      $region14: #{chessnet_forward.1} parent=11 // pred_check_branch
        %209 = sbr.rel (%p207) target = $region16
      $region15: #{chessnet_forward.1} parent=11 // pred_region
        _
      $region16: #{chessnet_forward.1} parent=11 // pred_fallthru
        _
      // Predicated region
      $region17: #{chessnet_forward.1} parent=11 // pred_check
        %p210 = pneg %p82
      $region18: #{chessnet_forward.1} parent=11 // pred_check_branch
        %212 = sbr.rel (%p210) target = $region20
      $region19: #{chessnet_forward.1} parent=11 // pred_region
        _
      $region20: #{chessnet_forward.1} parent=11 // pred_fallthru
        _
      // Predicated region
      $region21: #{chessnet_forward.1} parent=11 // pred_check
        %p213 = pneg %p103
      $region22: #{chessnet_forward.1} parent=11 // pred_check_branch
        %215 = sbr.rel (%p213) target = $region24
      $region23: #{chessnet_forward.1} parent=11 // pred_region
        _
      $region24: #{chessnet_forward.1} parent=11 // pred_fallthru
        _
      // Predicated region
      $region25: #{chessnet_forward.1} parent=11 // pred_check
        %p216 = pneg %p124
      $region26: #{chessnet_forward.1} parent=11 // pred_check_branch
        %218 = sbr.rel (%p216) target = $region28
      $region27: #{chessnet_forward.1} parent=11 // pred_region
        _
      $region28: #{chessnet_forward.1} parent=11 // pred_fallthru
        _
      // Predicated region
      $region29: #{chessnet_forward.1} parent=11 // pred_check
        %p219 = pneg %p145
      $region30: #{chessnet_forward.1} parent=11 // pred_check_branch
        %221 = sbr.rel (%p219) target = $region32
      $region31: #{chessnet_forward.1} parent=11 // pred_region
        _
      $region32: #{chessnet_forward.1} parent=11 // pred_fallthru
        _
      // Predicated region
      $region33: #{chessnet_forward.1} parent=11 // pred_check
        %p222 = pneg %p166
      $region34: #{chessnet_forward.1} parent=11 // pred_check_branch
        %224 = sbr.rel (%p222) target = $region36
      $region35: #{chessnet_forward.1} parent=11 // pred_region
        _
      $region36: #{chessnet_forward.1} parent=11 // pred_fallthru
        _
    $region12: #{chessnet_forward.1} parent=5 // pred_fallthru
      _
    %p225 = scmp.lt.s32.totalorder %s14, 2
    // Predicated region
    $region37: #{chessnet_forward.1} parent=5 // pred_check
      %p226 = pneg %p225
    $region38: #{chessnet_forward.1} parent=5 // pred_check_branch
      %228 = sbr.rel (%p226) target = $region40
    $region39: #{chessnet_forward.1} parent=5 // pred_region
      // Predicated region
      $region41: #{chessnet_forward.1} parent=39 // pred_check
        %p229 = pneg %p34
      $region42: #{chessnet_forward.1} parent=39 // pred_check_branch
        %231 = sbr.rel (%p229) target = $region44
      $region43: #{chessnet_forward.1} parent=39 // pred_region
        %s232 = smul.u32 3, %s14
        %s233 = ssub.s32 5, %s232
        %p234 = scmp.lt.s32.totalorder %s233, 3
        %s235 = scalar_select %p234, %s233, 3
        %s236 = smul.u32 128, %s235
        %p237 = scmp.lt.s32.totalorder %s232, 4
        %s238 = scalar_select %p237, %s232, 4
        %s239 = smul.addr %s238, 8
        %s240 = scalar_lea.vmem %s0, %s239
        %s241 = smul.u32 3, %s14
        %s242 = ssub.s32 5, %s241
        %p243 = scmp.lt.s32.totalorder %s242, 3
        %s244 = scalar_select %p243, %s242, 3
        %s245 = smul.u32 128, %s244
      $region44: #{chessnet_forward.1} parent=39 // pred_fallthru
        _
    $region40: #{chessnet_forward.1} parent=5 // pred_fallthru
      _
    %p246 = scmp.le.s32.totalorder 1, %s14
    %p247 = scmp.lt.s32.totalorder %s14, 3
    %p248 = pnand %p246, %p247
    %p249 = pneg %p248
    // Predicated region
    $region45: #{chessnet_forward.1} parent=5 // pred_check
      _
    $region46: #{chessnet_forward.1} parent=5 // pred_check_branch
      %251 = sbr.rel (%p248) target = $region48
    $region47: #{chessnet_forward.1} parent=5 // pred_region
      %s252 = ssub.s32 %s14, 1
      %s253 = smul.u32 3, %s19
      %s254 = ssub.s32 5, %s253
      %p255 = scmp.lt.s32.totalorder %s254, 3
      %s256 = scalar_select %p255, %s254, 3
      %s257 = smul.u32 128, %s256
      %p258 = scmp.lt.s32.totalorder %s253, 4
      %s259 = scalar_select %p258, %s253, 4
      %s260 = smul.addr %s259, 8
      %s261 = scalar_lea.vmem %s0, %s260
      %p262 = pneg %p40
      %p263 = pneg %p37
      %p264 = pneg %p61
      %p265 = pneg %p58
      %p266 = pneg %p82
      %p267 = pneg %p79
      %p268 = pneg %p103
      %p269 = pneg %p100
      %p270 = pneg %p124
      %p271 = pneg %p121
      %p272 = pneg %p145
      %p273 = pneg %p142
      %p274 = pneg %p166
      %p275 = pneg %p163
      %p276 = pneg %p192
      %p277 = pneg %p189
      %p278 = scmp.lt.s32.totalorder %s19, 1
      %s279 = scalar_select %p278, %s19, 1
      %s280 = scalar_lea.vmem %s7, %s279
      %s281 = smul.u32 3, %s19
      %s282 = ssub.s32 5, %s281
      %p283 = scmp.lt.s32.totalorder %s282, 3
      %s284 = scalar_select %p283, %s282, 3
      %s285 = smul.u32 128, %s284
      %p286 = scmp.lt.s32.totalorder %s281, 4
      %s287 = scalar_select %p286, %s281, 4
      %s288 = smul.addr %s287, 8
      %s289 = scalar_lea.vmem %s0, %s288
      %s290 = smul.u32 3, %s19
      %s291 = ssub.s32 5, %s290
      %p292 = scmp.lt.s32.totalorder %s291, 3
      %s293 = scalar_select %p292, %s291, 3
      %s294 = smul.u32 128, %s293
      %p295 = scmp.lt.s32.totalorder %s19, 1
      %s296 = scalar_select %p295, %s19, 1
      %s297 = scalar_lea.vmem %s7, %s296
      %v299 = vld [vmem:[%s289] sm:$0xff]
      %v300 = vld [vmem:[%s289 + $0x8] sm:$0xff]
      %v301 = vld [vmem:[%s289 + $0x10] sm:$0xff]
      %v302 = vpack.c.bf16 %v300, %v299
      %v303 = vpack.c.bf16 %v301, %v301
      %v304 = vld [vmem:[%s1] sm:$0xf]
      %v305 = vld [vmem:[%s1 + $0x4] sm:$0xf]
      %v306 = vld [vmem:[%s1 + $0x8] sm:$0xf]
      %v307 = vld [vmem:[%s1 + $0xc] sm:$0xf]
      %v308 = vld [vmem:[%s1 + $0x10] sm:$0xf]
      %v309 = vld [vmem:[%s1 + $0x14] sm:$0xf]
      %v310 = vld [vmem:[%s1 + $0x18] sm:$0xf]
      %v311 = vld [vmem:[%s1 + $0x1c] sm:$0xf]
      %v312 = vld [vmem:[%s2] sm:$0x1]
      %v314 = vlaneseq
      %v315 = vshrl.u32 %v314, 7
      %v316 = vsub.s32 0, %v315
      %v317 = vrot.slane %v312, %v316
      %v327 = vunpack.c.l.b16 %v304
      %v328 = vunpack.c.l.b16 %v305
      %v329 = vunpack.c.l.b16 %v306
      %v330 = vunpack.c.l.b16 %v307
      %v331 = vunpack.c.l.b16 %v308
      %v332 = vunpack.c.l.b16 %v309
      %v333 = vunpack.c.l.b16 %v310
      %v334 = vunpack.c.l.b16 %v311
      %v335 = vpack.c.b16 %v328, %v327
      %v336 = vpack.c.b16 %v330, %v329
      %v337 = vpack.c.b16 %v332, %v331
      %v338 = vpack.c.b16 %v334, %v333
      %vm343 = vcmask 523264
      %v345 = vsel %vm343, %v302, 0
      %v348 = vsel %vm343, %v303, 0
      %350 = vmatprep.subr.bf16.mxu0 0
      %351 = vmatpush1.bf16.msra.mxu0 %v335
      %352 = vmatprep.subr.bf16.mxu0 0
      %353 = vmatpush1.bf16.msra.mxu0 %v336
      %354 = vmatprep.subr.bf16.mxu0 0
      %355 = vmatpush1.bf16.msra.mxu0 %v337
      %356 = vmatprep.subr.bf16.mxu0 0
      %357 = vmatpush1.bf16.msra.mxu0 %v338
      %358 = vmatprep.subr.bf16.mxu0 0
      %359 = vmatpush1.bf16.msra.mxu0 0
      %360 = vmatprep.subr.bf16.mxu0 0
      %361 = vmatpush1.bf16.msra.mxu0 0
      %362 = vmatprep.subr.bf16.mxu0 0
      %363 = vmatpush1.bf16.msra.mxu0 0
      %364 = vmatprep.subr.bf16.mxu0 0
      %365 = vmatpush1.bf16.msra.mxu0 0
      %366 = vmatprep.subr.bf16.mxu0 0
      %367 = vmatpush1.bf16.msra.mxu0 0
      %368 = vmatprep.subr.bf16.mxu0 0
      %369 = vmatpush1.bf16.msra.mxu0 0
      %370 = vmatprep.subr.bf16.mxu0 0
      %371 = vmatpush1.bf16.msra.mxu0 0
      %372 = vmatprep.subr.bf16.mxu0 0
      %373 = vmatpush1.bf16.msra.mxu0 0
      %374 = vmatprep.subr.bf16.mxu0 0
      %375 = vmatpush1.bf16.msra.mxu0 0
      %376 = vmatprep.subr.bf16.mxu0 0
      %377 = vmatpush1.bf16.msra.mxu0 0
      %378 = vmatprep.subr.bf16.mxu0 0
      %379 = vmatpush1.bf16.msra.mxu0 0
      %380 = vmatprep.subr.bf16.mxu0 0
      %381 = vmatpush1.bf16.msra.mxu0 0
      %382 = vmatprep.mubr.bf16.mxu0 0
      %383 = vmatmul.mubr.bf16.gmra.mrb[0].mxu0 %v345
      %v384 = vpop.f32.mrb[0].mxu0
      %v385 = vadd.f32 %v317, %v384
      %v386 = vpop.f32.mrb[0].mxu0
      %v387 = vpop.f32.mrb[0].mxu0
      %v388 = vadd.f32 %v317, %v387
      %v389 = vpop.f32.mrb[0].mxu0
      %390 = vmatprep.mubr.bf16.mxu0 0
      %391 = vmatmul.mubr.bf16.gmra.mrb[0].mxu0 %v348
      %v392 = vpop.f32.mrb[0].mxu0
      %v393 = vadd.f32 %v317, %v392
      %v394 = vpop.f32.mrb[0].mxu0
      %v395 = vpop.f32.mrb[0].mxu0
      %v396 = vpop.f32.mrb[0].mxu0
      %397 = vdwg.mxu0
      %v398 = vmax.f32 %v385, 0.0
      %v399 = vmax.f32 %v388, 0.0
      %v400 = vmax.f32 %v393, 0.0
      %v401 = vpack.c.bf16 %v399, %v398
      %v402 = vpack.c.bf16 %v400, %v400
      %v403 = vld [vmem:[%s3] sm:$0xf]
      %v404 = vld [vmem:[%s3 + $0x4] sm:$0xf]
      %v405 = vld [vmem:[%s3 + $0x8] sm:$0xf]
      %v406 = vld [vmem:[%s3 + $0xc] sm:$0xf]
      %v407 = vld [vmem:[%s3 + $0x10] sm:$0xf]
      %v408 = vld [vmem:[%s3 + $0x14] sm:$0xf]
      %v409 = vld [vmem:[%s3 + $0x18] sm:$0xf]
      %v410 = vld [vmem:[%s3 + $0x1c] sm:$0xf]
      %v411 = vld [vmem:[%s3 + $0x20] sm:$0xf]
      %v412 = vld [vmem:[%s3 + $0x24] sm:$0xf]
      %v413 = vld [vmem:[%s3 + $0x28] sm:$0xf]
      %v414 = vld [vmem:[%s3 + $0x2c] sm:$0xf]
      %v415 = vld [vmem:[%s3 + $0x30] sm:$0xf]
      %v416 = vld [vmem:[%s3 + $0x34] sm:$0xf]
      %v417 = vld [vmem:[%s3 + $0x38] sm:$0xf]
      %v418 = vld [vmem:[%s3 + $0x3c] sm:$0xf]
      %v419 = vld [vmem:[%s4] sm:$0x1]
      %v421 = vlaneseq
      %v422 = vshrl.u32 %v421, 7
      %v423 = vsub.s32 0, %v422
      %v424 = vrot.slane %v419, %v423
      %v442 = vunpack.c.l.b16 %v403
      %v443 = vunpack.c.l.b16 %v404
      %v444 = vunpack.c.l.b16 %v405
      %v445 = vunpack.c.l.b16 %v406
      %v446 = vunpack.c.l.b16 %v407
      %v447 = vunpack.c.l.b16 %v408
      %v448 = vunpack.c.l.b16 %v409
      %v449 = vunpack.c.l.b16 %v410
      %v450 = vunpack.c.l.b16 %v411
      %v451 = vunpack.c.l.b16 %v412
      %v452 = vunpack.c.l.b16 %v413
      %v453 = vunpack.c.l.b16 %v414
      %v454 = vunpack.c.l.b16 %v415
      %v455 = vunpack.c.l.b16 %v416
      %v456 = vunpack.c.l.b16 %v417
      %v457 = vunpack.c.l.b16 %v418
      %v458 = vpack.c.b16 %v443, %v442
      %v459 = vpack.c.b16 %v445, %v444
      %v460 = vpack.c.b16 %v447, %v446
      %v461 = vpack.c.b16 %v449, %v448
      %v462 = vpack.c.b16 %v451, %v450
      %v463 = vpack.c.b16 %v453, %v452
      %v464 = vpack.c.b16 %v455, %v454
      %v465 = vpack.c.b16 %v457, %v456
      %474 = vmatprep.subr.bf16.mxu0 0
      %475 = vmatpush1.bf16.msra.mxu0 %v458
      %476 = vmatprep.subr.bf16.mxu0 0
      %477 = vmatpush1.bf16.msra.mxu0 %v459
      %478 = vmatprep.subr.bf16.mxu0 0
      %479 = vmatpush1.bf16.msra.mxu0 %v460
      %480 = vmatprep.subr.bf16.mxu0 0
      %481 = vmatpush1.bf16.msra.mxu0 %v461
      %482 = vmatprep.subr.bf16.mxu0 0
      %483 = vmatpush1.bf16.msra.mxu0 %v462
      %484 = vmatprep.subr.bf16.mxu0 0
      %485 = vmatpush1.bf16.msra.mxu0 %v463
      %486 = vmatprep.subr.bf16.mxu0 0
      %487 = vmatpush1.bf16.msra.mxu0 %v464
      %488 = vmatprep.subr.bf16.mxu0 0
      %489 = vmatpush1.bf16.msra.mxu0 %v465
      %490 = vmatprep.subr.bf16.mxu0 0
      %491 = vmatpush1.bf16.msra.mxu0 0
      %492 = vmatprep.subr.bf16.mxu0 0
      %493 = vmatpush1.bf16.msra.mxu0 0
      %494 = vmatprep.subr.bf16.mxu0 0
      %495 = vmatpush1.bf16.msra.mxu0 0
      %496 = vmatprep.subr.bf16.mxu0 0
      %497 = vmatpush1.bf16.msra.mxu0 0
      %498 = vmatprep.subr.bf16.mxu0 0
      %499 = vmatpush1.bf16.msra.mxu0 0
      %500 = vmatprep.subr.bf16.mxu0 0
      %501 = vmatpush1.bf16.msra.mxu0 0
      %502 = vmatprep.subr.bf16.mxu0 0
      %503 = vmatpush1.bf16.msra.mxu0 0
      %504 = vmatprep.subr.bf16.mxu0 0
      %505 = vmatpush1.bf16.msra.mxu0 0
      %506 = vmatprep.mubr.bf16.mxu0 0
      %507 = vmatmul.mubr.bf16.gmra.mrb[0].mxu0 %v401
      %v508 = vpop.f32.mrb[0].mxu0
      %v509 = vadd.f32 %v424, %v508
      %v510 = vpop.f32.mrb[0].mxu0
      %v511 = vpop.f32.mrb[0].mxu0
      %v512 = vadd.f32 %v424, %v511
      %v513 = vpop.f32.mrb[0].mxu0
      %514 = vmatprep.mubr.bf16.mxu0 0
      %515 = vmatmul.mubr.bf16.gmra.mrb[0].mxu0 %v402
      %v516 = vpop.f32.mrb[0].mxu0
      %v517 = vadd.f32 %v424, %v516
      %v518 = vpop.f32.mrb[0].mxu0
      %v519 = vpop.f32.mrb[0].mxu0
      %v520 = vpop.f32.mrb[0].mxu0
      %521 = vdwg.mxu0
      %v522 = vmax.f32 %v509, 0.0
      %v523 = vmax.f32 %v512, 0.0
      %v524 = vmax.f32 %v517, 0.0
      %v525 = vld [vmem:[%s5] sm:$0x1]
      %v526 = vpack.c.bf16 %v523, %v522
      %v527 = vpack.c.bf16 %v524, %v524
      %s528 = sld [smem:[#allocation2]]
      %v529 = vstv %s528
      %v531 = vsel %vm343, %v525, 0
      %v534 = vsel %vm343, %v526, 0
      %v537 = vsel %vm343, %v527, 0
      %539 = vmatprep.subr.bf16.mxu0 0
      %540 = vmatpush1.bf16.xpose.msra.mxu0 %v534
      %541 = vmatprep.subr.bf16.mxu0 0
      %542 = vmatpush1.bf16.xpose.msra.mxu0 %v537
      %543 = vmatprep.subr.bf16.mxu0 0
      %544 = vmatpush1.bf16.xpose.msra.mxu0 0
      %545 = vmatprep.subr.bf16.mxu0 0
      %546 = vmatpush1.bf16.xpose.msra.mxu0 0
      %547 = vmatprep.subr.bf16.mxu0 0
      %548 = vmatpush1.bf16.xpose.msra.mxu0 0
      %549 = vmatprep.subr.bf16.mxu0 0
      %550 = vmatpush1.bf16.xpose.msra.mxu0 0
      %551 = vmatprep.subr.bf16.mxu0 0
      %552 = vmatpush1.bf16.xpose.msra.mxu0 0
      %553 = vmatprep.subr.bf16.mxu0 0
      %554 = vmatpush1.bf16.xpose.msra.mxu0 0
      %555 = vmatprep.subr.bf16.mxu0 0
      %556 = vmatpush1.bf16.xpose.msra.mxu0 0
      %557 = vmatprep.subr.bf16.mxu0 0
      %558 = vmatpush1.bf16.xpose.msra.mxu0 0
      %559 = vmatprep.subr.bf16.mxu0 0
      %560 = vmatpush1.bf16.xpose.msra.mxu0 0
      %561 = vmatprep.subr.bf16.mxu0 0
      %562 = vmatpush1.bf16.xpose.msra.mxu0 0
      %563 = vmatprep.subr.bf16.mxu0 0
      %564 = vmatpush1.bf16.xpose.msra.mxu0 0
      %565 = vmatprep.subr.bf16.mxu0 0
      %566 = vmatpush1.bf16.xpose.msra.mxu0 0
      %567 = vmatprep.subr.bf16.mxu0 0
      %568 = vmatpush1.bf16.xpose.msra.mxu0 0
      %569 = vmatprep.subr.bf16.mxu0 0
      %570 = vmatpush1.bf16.xpose.msra.mxu0 0
      %571 = vmatprep.mubr.bf16.mxu0 0
      %572 = vmatmul.mubr.bf16.gmra.mrb[0].mxu0 %v531
      %v573 = vpop.f32.mrb[0].mxu0
      %v574 = vadd.f32 %v529, %v573
      %v575 = vpop.f32.mrb[0].mxu0
      %v576 = vpop.f32.mrb[0].mxu0
      %v577 = vpop.f32.mrb[0].mxu0
      %578 = vdwg.mxu0
      %v579 = vtanh.pop %v574
      %vm580 = vcmask 188416
      %581 = vst.msk [vmem:[%s297] sm:$0x1] %vm580, %v579
      %p582 = scmp.lt.s32.totalorder %s19, 1
      %s583 = scalar_select %p582, %s19, 1
      %s584 = scalar_lea.vmem %s7, %s583
      // Predicated region
      $region49: #{chessnet_forward.1} parent=47 // pred_check
        %p585 = pneg %p189
      $region50: #{chessnet_forward.1} parent=47 // pred_check_branch
        %587 = sbr.rel (%p585) target = $region52
      $region51: #{chessnet_forward.1} parent=47 // pred_region
        _
      $region52: #{chessnet_forward.1} parent=47 // pred_fallthru
        _
    $region48: #{chessnet_forward.1} parent=5 // pred_fallthru
      _
    %p588 = scmp.le.s32.totalorder 2, %s14
    // Predicated region
    $region53: #{chessnet_forward.1} parent=5 // pred_check
      %p589 = pneg %p588
    $region54: #{chessnet_forward.1} parent=5 // pred_check_branch
      %591 = sbr.rel (%p589) target = $region56
    $region55: #{chessnet_forward.1} parent=5 // pred_region
      %s592 = ssub.s32 %s14, 2
      // Predicated region
      $region57: #{chessnet_forward.1} parent=55 // pred_check
        %p593 = pneg %p195
      $region58: #{chessnet_forward.1} parent=55 // pred_check_branch
        %595 = sbr.rel (%p593) target = $region60
      $region59: #{chessnet_forward.1} parent=55 // pred_region
        %p596 = scmp.lt.s32.totalorder %s20, 1
        %s597 = scalar_select %p596, %s20, 1
        %s598 = scalar_lea.vmem %s7, %s597
      $region60: #{chessnet_forward.1} parent=55 // pred_fallthru
        _
    $region56: #{chessnet_forward.1} parent=5 // pred_fallthru
      _
  $region6: #{chessnet_forward.1} parent=0 // loop_footer
    %s18 = sadd.s32 1, %s14
  $region7: #{chessnet_forward.1} parent=0 // loop_footer_branch
    %13 = sbr.rel target = $region3
  $region8: #{chessnet_forward.1} parent=0 // loop_exit
    _

</llo_original>
